<compile_context>
chip_gen: v7x
topology: tpu7x:2x2x1
jax: 0.10.0
libtpu: 0.0.40
codegen_flags: <defaults>
</compile_context>

<pallas_src>
import jax
import jax.numpy as jnp
from jax.experimental import pallas as pl
from jax.experimental.pallas import tpu as pltpu


def _make_message_kernel(u_ref, v_ref, e_ref, adj_ref, w3_ref, out_ref):
    # u_ref   : (1, N,  M)   u[b, j]  = h[b, j] @ W1 + bias
    # v_ref   : (1, TI, M)   v[b, i]  = h[b, i] @ W2   (i-rows of this tile)
    # e_ref   : (1, TR, E)   rows r = (i - i0)*N + j of e[b] for this tile
    # adj_ref : (1, TR, 1)
    # w3_ref  : (E, M)
    # out_ref : (1, TR, M)
    ti = v_ref.shape[1]
    n = u_ref.shape[1]
    m = u_ref.shape[2]

    # Single remaining matmul: e @ W3 on the MXU with f32 accumulation.
    # (K = E is small; the kernel is HBM-bound, so no padding tricks.)
    acc = jnp.dot(e_ref[0], w3_ref[...], preferred_element_type=jnp.float32)

    # Broadcast v over the j-columns and u over the i-rows of the tile, then
    # collapse back to flattened rows.  Layout no-op when N % 8 == 0.
    uv = (v_ref[0][:, None, :] + u_ref[0][None, :, :]).reshape(ti * n, m)

    acc = (acc + uv) * adj_ref[0]          # adjacency mask, (TR, 1) lane-bcast
    out_ref[0] = acc.astype(out_ref.dtype)


def _choose_i_tile(n, target_rows=2048):
    """Largest i-tile TI (divisor of N) with TI*N <= target_rows and a
    sublane-friendly size (TI % 8 == 0); falls back to one tile per batch."""
    if n * n <= target_rows:
        return n
    best = None
    for t in range(8, n, 8):
        if n % t == 0 and t * n <= target_rows:
            best = t
    return best if best is not None else n


def mpnn_make_message(h, e, adj, weight, bias):
    """weight: (m_dim, 2*h_dim + e_dim) as in nn.Linear; bias: (m_dim,)."""
    b, n, hd = h.shape
    ed = e.shape[-1]
    md = weight.shape[0]
    r = n * n

    # Split the Linear weight: cat columns are [h[b, j], h[b, i], e[b, i, j]].
    wt = weight.T                                  # (2H+E, M)
    w1, w2, w3 = wt[:hd], wt[hd:2 * hd], wt[2 * hd:]

    # Algebraic hoist: per-node contributions (tiny (b, N, M) matmuls in XLA).
    u = jnp.einsum("bnh,hm->bnm", h, w1,
                   precision=jax.lax.Precision.HIGHEST) + bias   # bias folded in
    v = jnp.einsum("bnh,hm->bnm", h, w2,
                   precision=jax.lax.Precision.HIGHEST)

    e_flat = e.reshape(b, r, ed)                          # free view
    # Keep adj as f32 so weighted (non-binary) adjacency keeps exact semantics.
    adj_flat = adj.reshape(b, r, 1).astype(jnp.float32)

    ti = _choose_i_tile(n)
    tr = ti * n
    n_tiles = n // ti

    out_flat = pl.pallas_call(
        _make_message_kernel,
        out_shape=jax.ShapeDtypeStruct((b, r, md), jnp.float32),
        grid=(b, n_tiles),
        in_specs=[
            pl.BlockSpec((1, n, md), lambda bi, ri: (bi, 0, 0)),    # u (full per batch)
            pl.BlockSpec((1, ti, md), lambda bi, ri: (bi, ri, 0)),  # v (i-tile)
            pl.BlockSpec((1, tr, ed), lambda bi, ri: (bi, ri, 0)),  # e rows
            pl.BlockSpec((1, tr, 1), lambda bi, ri: (bi, ri, 0)),   # adj rows
            pl.BlockSpec((ed, md), lambda bi, ri: (0, 0)),          # W3
        ],
        out_specs=pl.BlockSpec((1, tr, md), lambda bi, ri: (bi, ri, 0)),
        compiler_params=pltpu.CompilerParams(
            dimension_semantics=("parallel", "parallel"),
            vmem_limit_bytes=32 * 1024 * 1024,
        ),
    )(u, v, e_flat, adj_flat, w3)

    return out_flat.reshape(b, n, n, md)


def _reference(h, e, adj, weight, bias):
    b, n, hd = h.shape
    h1 = jnp.broadcast_to(h[:, None, :, :], (b, n, n, hd))
    h2 = jnp.broadcast_to(h[:, :, None, :], (b, n, n, hd))
    cat = jnp.concatenate([h1, h2, e], axis=3)
    m = jnp.einsum("bijk,mk->bijm", cat, weight,
                   precision=jax.lax.Precision.HIGHEST) + bias
    return m * adj[..., None]


if __name__ == "__main__":
    # Small shapes consistent with the module's forward.
    b, N, h_dim, e_dim, m_dim = 2, 8, 16, 8, 32

    key = jax.random.PRNGKey(0)
    k_h, k_e, k_adj, k_w, k_b = jax.random.split(key, 5)

    h = jax.random.normal(k_h, (b, N, h_dim), dtype=jnp.float32)
    e = jax.random.normal(k_e, (b, N, N, e_dim), dtype=jnp.float32)
    adj = (jax.random.uniform(k_adj, (b, N, N)) > 0.5).astype(jnp.float32)

    # Deterministic Linear params (PyTorch-style uniform(-k, k), k=1/sqrt(fan_in)).
    fan_in = 2 * h_dim + e_dim
    bound = 1.0 / jnp.sqrt(jnp.float32(fan_in))
    weight = jax.random.uniform(k_w, (m_dim, fan_in), jnp.float32, -bound, bound)
    bias = jax.random.uniform(k_b, (m_dim,), jnp.float32, -bound, bound)

    out = mpnn_make_message(h, e, adj, weight, bias)
    out = jax.block_until_ready(out)

    ref = _reference(h, e, adj, weight, bias)
    assert out.shape == (b, N, N, m_dim)
    # Split-sum order differs from the fused reference matmul; 1e-4 is tight
    # for f32 while tolerating a few ulps of reassociation.
    assert jnp.allclose(out, ref, atol=1e-4, rtol=1e-4), "mismatch vs reference"

    print("KERNEL_OK")
</pallas_src>

<mosaic_0001>
module attributes {stable_mosaic.version = 11 : i64} {
  func.func @_make_message_kernel(%arg0: i32, %arg1: i32, %arg2: memref<1x8x32xf32, #tpu.memory_space<vmem>>, %arg3: memref<1x8x32xf32, #tpu.memory_space<vmem>>, %arg4: memref<1x64x8xf32, #tpu.memory_space<vmem>>, %arg5: memref<1x64x1xf32, #tpu.memory_space<vmem>>, %arg6: memref<8x32xf32, #tpu.memory_space<vmem>>, %arg7: memref<1x64x32xf32, #tpu.memory_space<vmem>>) attributes {dimension_semantics = [#tpu.dimension_semantics<parallel>, #tpu.dimension_semantics<parallel>], iteration_bounds = array<i64: 2, 1>, scalar_prefetch = 0 : i64, scratch_operands = 0 : i64, tpu.core_type = #tpu.core_type<tc>, window_params = [{transform_indices = @transform_0, window_bounds = array<i64: 1, 8, 32>}, {transform_indices = @transform_1, window_bounds = array<i64: 1, 8, 32>}, {transform_indices = @transform_2, window_bounds = array<i64: 1, 64, 8>}, {transform_indices = @transform_3, window_bounds = array<i64: 1, 64, 1>}, {pipeline_mode = #tpu.pipeline_mode<synchronous>, transform_indices = @transform_4, window_bounds = array<i64: 8, 32>}, {transform_indices = @transform_5, window_bounds = array<i64: 1, 64, 32>}]} {
    %c0 = arith.constant 0 : index
    %c0_0 = arith.constant 0 : index
    %c0_1 = arith.constant 0 : index
    %0 = vector.load %arg4[%c0, %c0_0, %c0_1] : memref<1x64x8xf32, #tpu.memory_space<vmem>>, vector<1x64x8xf32>
    %1 = vector.shape_cast %0 : vector<1x64x8xf32> to vector<64x8xf32>
    %c0_2 = arith.constant 0 : index
    %c0_3 = arith.constant 0 : index
    %2 = vector.load %arg6[%c0_2, %c0_3] : memref<8x32xf32, #tpu.memory_space<vmem>>, vector<8x32xf32>
    %cst = arith.constant dense<0.000000e+00> : vector<64x32xf32>
    %3 = tpu.matmul %1, %2, %cst {dimension_numbers = #tpu.dot_dimension_numbers<[1], [0], [0], [1], [0, 0, 1, 1], [], []>} : vector<64x8xf32>, vector<8x32xf32>, vector<64x32xf32> -> vector<64x32xf32>
    %c0_4 = arith.constant 0 : index
    %c0_5 = arith.constant 0 : index
    %c0_6 = arith.constant 0 : index
    %4 = vector.load %arg3[%c0_4, %c0_5, %c0_6] : memref<1x8x32xf32, #tpu.memory_space<vmem>>, vector<1x8x32xf32>
    %5 = vector.shape_cast %4 : vector<1x8x32xf32> to vector<8x32xf32>
    %6 = vector.shape_cast %5 : vector<8x32xf32> to vector<8x1x32xf32>
    %c0_7 = arith.constant 0 : index
    %c0_8 = arith.constant 0 : index
    %c0_9 = arith.constant 0 : index
    %7 = vector.load %arg2[%c0_7, %c0_8, %c0_9] : memref<1x8x32xf32, #tpu.memory_space<vmem>>, vector<1x8x32xf32>
    %8 = vector.shape_cast %7 : vector<1x8x32xf32> to vector<8x32xf32>
    %9 = vector.shape_cast %8 : vector<8x32xf32> to vector<1x8x32xf32>
    %10 = vector.broadcast %6 : vector<8x1x32xf32> to vector<8x8x32xf32>
    %11 = vector.broadcast %9 : vector<1x8x32xf32> to vector<8x8x32xf32>
    %12 = arith.addf %10, %11 : vector<8x8x32xf32>
    %13 = vector.shape_cast %12 : vector<8x8x32xf32> to vector<64x32xf32>
    %14 = arith.addf %3, %13 : vector<64x32xf32>
    %c0_10 = arith.constant 0 : index
    %c0_11 = arith.constant 0 : index
    %c0_12 = arith.constant 0 : index
    %15 = vector.load %arg5[%c0_10, %c0_11, %c0_12] : memref<1x64x1xf32, #tpu.memory_space<vmem>>, vector<1x64x1xf32>
    %16 = vector.shape_cast %15 : vector<1x64x1xf32> to vector<64x1xf32>
    %17 = vector.broadcast %16 : vector<64x1xf32> to vector<64x32xf32>
    %18 = arith.mulf %14, %17 : vector<64x32xf32>
    %c0_13 = arith.constant 0 : index
    %c0_14 = arith.constant 0 : index
    %c0_15 = arith.constant 0 : index
    %19 = vector.load %arg7[%c0_13, %c0_14, %c0_15] : memref<1x64x32xf32, #tpu.memory_space<vmem>>, vector<1x64x32xf32>
    %20 = vector.shape_cast %19 : vector<1x64x32xf32> to vector<64x32xf32>
    %21 = vector.shape_cast %18 : vector<64x32xf32> to vector<1x64x32xf32>
    tpu.vector_store %arg7[%c0_13, %c0_14, %c0_15], %21 {strides = array<i32>} : memref<1x64x32xf32, #tpu.memory_space<vmem>>, vector<1x64x32xf32>,
    return
  }
  func.func @transform_0(%arg0: i32, %arg1: i32) -> (i32, i32, i32) {
    %c0_i32 = arith.constant 0 : i32
    %c0_i32_0 = arith.constant 0 : i32
    %c0_i32_1 = arith.constant 0 : i32
    return %arg0, %c0_i32, %c0_i32_0 : i32, i32, i32
  }
  func.func @transform_1(%arg0: i32, %arg1: i32) -> (i32, i32, i32) {
    %c0_i32 = arith.constant 0 : i32
    %c0_i32_0 = arith.constant 0 : i32
    return %arg0, %arg1, %c0_i32 : i32, i32, i32
  }
  func.func @transform_2(%arg0: i32, %arg1: i32) -> (i32, i32, i32) {
    %c0_i32 = arith.constant 0 : i32
    %c0_i32_0 = arith.constant 0 : i32
    return %arg0, %arg1, %c0_i32 : i32, i32, i32
  }
  func.func @transform_3(%arg0: i32, %arg1: i32) -> (i32, i32, i32) {
    %c0_i32 = arith.constant 0 : i32
    %c0_i32_0 = arith.constant 0 : i32
    return %arg0, %arg1, %c0_i32 : i32, i32, i32
  }
  func.func @transform_4(%arg0: i32, %arg1: i32) -> (i32, i32) {
    %c0_i32 = arith.constant 0 : i32
    %c0_i32_0 = arith.constant 0 : i32
    %c0_i32_1 = arith.constant 0 : i32
    return %c0_i32, %c0_i32_0 : i32, i32
  }
  func.func @transform_5(%arg0: i32, %arg1: i32) -> (i32, i32, i32) {
    %c0_i32 = arith.constant 0 : i32
    %c0_i32_0 = arith.constant 0 : i32
    return %arg0, %arg1, %c0_i32 : i32, i32, i32
  }
}

</mosaic_0001>

<llo_original>
// kernel: tpu_custom_call.1
$region0: #{tpu_custom_call.1}
  #allocation0 [shape = 'u32[]', space=smem, size = 0x4, offset = 0x4, fixed_abs, tag = 'smem constant byte address 0x4 - core index']
  #allocation1 [shape = 'u32[144,128]{1,0:T(1,128)}', space=vmem, size = 0x12000, scoped, tag = 'internal scratch']
  %s0 = inlined_call_operand.vmem [shape: f32[2,8,32], index: 0, kind: input, shape index: {}]
  %s1 = inlined_call_operand.vmem [shape: f32[2,8,32], index: 1, kind: input, shape index: {}]
  %s2 = inlined_call_operand.vmem [shape: f32[2,64,8], index: 2, kind: input, shape index: {}]
  %s3 = inlined_call_operand.vmem [shape: f32[2,64,1], index: 3, kind: input, shape index: {}]
  %s4 = inlined_call_operand.vmem [shape: f32[8,32], index: 4, kind: input, shape index: {}]
  %s5 = inlined_call_operand.vmem [shape: f32[2,64,32], index: 5, kind: output, shape index: {}]
  %s6 = sld [smem:[#allocation0]]
  $region53: #{tpu_custom_call.1} parent=0
    _
  %s8 = ssub.s32 1, %s6
  %s9 = scalar_select 0, %s8, %s6
  loop: start=0, step=1, limit=4
  $region2: #{tpu_custom_call.1} parent=0 // loop_pre_header
    _
  $region3: #{tpu_custom_call.1} parent=0 // loop_header
    %s11 = sphi 0, %s15
    %p12 = scmp.ge.s32.totalorder %s11, 4
    %s18 = sphi 0, %s30
    %s19 = sphi 0, %s26
    %s20 = sphi 0, %s18
    %s21 = sphi 0, %s19
    %s22 = sphi 0, %s20
    %s23 = sphi 0, %s21
    %s33 = sphi 0, %s35
    %s36 = sphi 0, %s33
    %s37 = sphi 0, %s36
    %s53 = sphi 0, %s37
    %s61 = sphi 0, %s63
    %s64 = sphi 0, %s61
    %s65 = sphi 0, %s64
    %s81 = sphi 0, %s65
    %s89 = sphi 0, %s91
    %s92 = sphi 0, %s89
    %s93 = sphi 0, %s92
    %s109 = sphi 0, %s93
    %s117 = sphi 0, %s119
    %s120 = sphi 0, %s117
    %s121 = sphi 0, %s120
    %s137 = sphi 0, %s121
    %s141 = sphi 0, %s141
    %s143 = sphi 0, %s141
    %s144 = sphi 0, %s143
    %s158 = sphi 0, %s144
    %s166 = sphi 0, %s168
    %s169 = sphi 0, %s166
    %s170 = sphi 0, %s169
    %s186 = sphi 0, %s170
  $region4: #{tpu_custom_call.1} parent=0 // loop_header_branch
    %14 = sbr.rel (%p12) target = $region8
  $region5: #{tpu_custom_call.1} parent=0 // loop_body
    %s16 = ssub.s32 %s11, 1
    %s17 = ssub.s32 %s11, 2
    %s24 = sadd.s32 1, %s19
    %p25 = scmp.ge.s32.totalorder %s24, 1
    %s26 = scalar_select %p25, 0, %s24
    %s27 = sadd.s32 1, %s18
    %s28 = scalar_select %p25, %s27, %s18
    %p29 = scmp.ge.s32.totalorder %s28, 2
    %s30 = scalar_select %p29, 0, %s28
    %s31 = ssub.s32 %s18, %s30
    %p32 = scmp.eq.s32.totalorder %s31, 0
    %s34 = sadd.s32 %s33, 1
    %s35 = scalar_select %p32, %s33, %s34
    %p38 = pneg %p32
    %p39 = scmp.eq.s32.totalorder %s11, 1
    %p40 = por %p38, %p39
    %p41 = scmp.ne.s32.totalorder %s33, %s36
    %p42 = scmp.eq.s32.totalorder %s11, 0
    %p43 = por %p41, %p42
    %p44 = scmp.ne.s32.totalorder %s33, %s36
    %p45 = scmp.eq.s32.totalorder %s16, 1
    %p46 = por %p44, %p45
    %p47 = scmp.ne.s32.totalorder %s36, %s37
    %p48 = scmp.eq.s32.totalorder %s16, 0
    %p49 = por %p47, %p48
    %p50 = scmp.ne.s32.totalorder %s36, %s37
    %p51 = scmp.eq.s32.totalorder %s17, 1
    %p52 = por %p50, %p51
    %p54 = scmp.ne.s32.totalorder %s37, %s53
    %p55 = scmp.eq.s32.totalorder %s17, 0
    %p56 = por %p54, %p55
    %s57 = ssub.s32 %s18, %s30
    %s58 = ssub.s32 %s19, %s26
    %s59 = sor.u32 %s57, %s58
    %p60 = scmp.eq.s32.totalorder %s59, 0
    %s62 = sadd.s32 %s61, 1
    %s63 = scalar_select %p60, %s61, %s62
    %p66 = pneg %p60
    %p67 = scmp.eq.s32.totalorder %s11, 1
    %p68 = por %p66, %p67
    %p69 = scmp.ne.s32.totalorder %s61, %s64
    %p70 = scmp.eq.s32.totalorder %s11, 0
    %p71 = por %p69, %p70
    %p72 = scmp.ne.s32.totalorder %s61, %s64
    %p73 = scmp.eq.s32.totalorder %s16, 1
    %p74 = por %p72, %p73
    %p75 = scmp.ne.s32.totalorder %s64, %s65
    %p76 = scmp.eq.s32.totalorder %s16, 0
    %p77 = por %p75, %p76
    %p78 = scmp.ne.s32.totalorder %s64, %s65
    %p79 = scmp.eq.s32.totalorder %s17, 1
    %p80 = por %p78, %p79
    %p82 = scmp.ne.s32.totalorder %s65, %s81
    %p83 = scmp.eq.s32.totalorder %s17, 0
    %p84 = por %p82, %p83
    %s85 = ssub.s32 %s18, %s30
    %s86 = ssub.s32 %s19, %s26
    %s87 = sor.u32 %s85, %s86
    %p88 = scmp.eq.s32.totalorder %s87, 0
    %s90 = sadd.s32 %s89, 1
    %s91 = scalar_select %p88, %s89, %s90
    %p94 = pneg %p88
    %p95 = scmp.eq.s32.totalorder %s11, 1
    %p96 = por %p94, %p95
    %p97 = scmp.ne.s32.totalorder %s89, %s92
    %p98 = scmp.eq.s32.totalorder %s11, 0
    %p99 = por %p97, %p98
    %p100 = scmp.ne.s32.totalorder %s89, %s92
    %p101 = scmp.eq.s32.totalorder %s16, 1
    %p102 = por %p100, %p101
    %p103 = scmp.ne.s32.totalorder %s92, %s93
    %p104 = scmp.eq.s32.totalorder %s16, 0
    %p105 = por %p103, %p104
    %p106 = scmp.ne.s32.totalorder %s92, %s93
    %p107 = scmp.eq.s32.totalorder %s17, 1
    %p108 = por %p106, %p107
    %p110 = scmp.ne.s32.totalorder %s93, %s109
    %p111 = scmp.eq.s32.totalorder %s17, 0
    %p112 = por %p110, %p111
    %s113 = ssub.s32 %s18, %s30
    %s114 = ssub.s32 %s19, %s26
    %s115 = sor.u32 %s113, %s114
    %p116 = scmp.eq.s32.totalorder %s115, 0
    %s118 = sadd.s32 %s117, 1
    %s119 = scalar_select %p116, %s117, %s118
    %p122 = pneg %p116
    %p123 = scmp.eq.s32.totalorder %s11, 1
    %p124 = por %p122, %p123
    %p125 = scmp.ne.s32.totalorder %s117, %s120
    %p126 = scmp.eq.s32.totalorder %s11, 0
    %p127 = por %p125, %p126
    %p128 = scmp.ne.s32.totalorder %s117, %s120
    %p129 = scmp.eq.s32.totalorder %s16, 1
    %p130 = por %p128, %p129
    %p131 = scmp.ne.s32.totalorder %s120, %s121
    %p132 = scmp.eq.s32.totalorder %s16, 0
    %p133 = por %p131, %p132
    %p134 = scmp.ne.s32.totalorder %s120, %s121
    %p135 = scmp.eq.s32.totalorder %s17, 1
    %p136 = por %p134, %p135
    %p138 = scmp.ne.s32.totalorder %s121, %s137
    %p139 = scmp.eq.s32.totalorder %s17, 0
    %p140 = por %p138, %p139
    %s142 = sadd.s32 %s141, 1
    %p145 = scmp.eq.s32.totalorder %s11, 1
    %p146 = scmp.ne.s32.totalorder %s141, %s143
    %p147 = scmp.eq.s32.totalorder %s11, 0
    %p148 = por %p146, %p147
    %p149 = scmp.ne.s32.totalorder %s141, %s143
    %p150 = scmp.eq.s32.totalorder %s16, 1
    %p151 = por %p149, %p150
    %p152 = scmp.ne.s32.totalorder %s143, %s144
    %p153 = scmp.eq.s32.totalorder %s16, 0
    %p154 = por %p152, %p153
    %p155 = scmp.ne.s32.totalorder %s143, %s144
    %p156 = scmp.eq.s32.totalorder %s17, 1
    %p157 = por %p155, %p156
    %p159 = scmp.ne.s32.totalorder %s144, %s158
    %p160 = scmp.eq.s32.totalorder %s17, 0
    %p161 = por %p159, %p160
    %s162 = ssub.s32 %s18, %s30
    %s163 = ssub.s32 %s19, %s26
    %s164 = sor.u32 %s162, %s163
    %p165 = scmp.eq.s32.totalorder %s164, 0
    %s167 = sadd.s32 %s166, 1
    %s168 = scalar_select %p165, %s166, %s167
    %p171 = pneg %p165
    %p172 = scmp.eq.s32.totalorder %s11, 1
    %p173 = por %p171, %p172
    %p174 = scmp.ne.s32.totalorder %s166, %s169
    %p175 = scmp.eq.s32.totalorder %s11, 0
    %p176 = por %p174, %p175
    %p177 = scmp.ne.s32.totalorder %s166, %s169
    %p178 = scmp.eq.s32.totalorder %s16, 1
    %p179 = por %p177, %p178
    %p180 = scmp.ne.s32.totalorder %s169, %s170
    %p181 = scmp.eq.s32.totalorder %s16, 0
    %p182 = por %p180, %p181
    %p183 = scmp.ne.s32.totalorder %s169, %s170
    %p184 = scmp.eq.s32.totalorder %s17, 1
    %p185 = por %p183, %p184
    %p187 = scmp.ne.s32.totalorder %s170, %s186
    %p188 = scmp.eq.s32.totalorder %s17, 0
    %p189 = por %p187, %p188
    %p190 = scmp.le.s32.totalorder 1, %s11
    %p191 = scmp.lt.s32.totalorder %s11, 3
    %p192 = pnand %p190, %p191
    %p193 = pneg %p192
    // Predicated region
    $region9: #{tpu_custom_call.1} parent=5 // pred_check
      _
    $region10: #{tpu_custom_call.1} parent=5 // pred_check_branch
      %195 = sbr.rel (%p192) target = $region12
    $region11: #{tpu_custom_call.1} parent=5 // pred_region
      %s196 = ssub.s32 %s11, 1
      // Predicated region
      $region13: #{tpu_custom_call.1} parent=11 // pred_check
        %p197 = pneg %p154
      $region14: #{tpu_custom_call.1} parent=11 // pred_check_branch
        %199 = sbr.rel (%p197) target = $region16
      $region15: #{tpu_custom_call.1} parent=11 // pred_region
        _
      $region16: #{tpu_custom_call.1} parent=11 // pred_fallthru
        _
    $region12: #{tpu_custom_call.1} parent=5 // pred_fallthru
      _
    %p200 = scmp.lt.s32.totalorder %s11, 2
    // Predicated region
    $region17: #{tpu_custom_call.1} parent=5 // pred_check
      %p201 = pneg %p200
    $region18: #{tpu_custom_call.1} parent=5 // pred_check_branch
      %203 = sbr.rel (%p201) target = $region20
    $region19: #{tpu_custom_call.1} parent=5 // pred_region
      // Predicated region
      $region21: #{tpu_custom_call.1} parent=19 // pred_check
        %p204 = pneg %p43
      $region22: #{tpu_custom_call.1} parent=19 // pred_check_branch
        %206 = sbr.rel (%p204) target = $region24
      $region23: #{tpu_custom_call.1} parent=19 // pred_region
        %p207 = scmp.lt.s32.totalorder %s18, 1
        %s208 = scalar_select %p207, %s18, 1
        %s209 = smul.addr %s208, 8
        %s210 = scalar_lea.vmem %s0, %s209
      $region24: #{tpu_custom_call.1} parent=19 // pred_fallthru
        _
      // Predicated region
      $region25: #{tpu_custom_call.1} parent=19 // pred_check
        %p211 = pneg %p71
      $region26: #{tpu_custom_call.1} parent=19 // pred_check_branch
        %213 = sbr.rel (%p211) target = $region28
      $region27: #{tpu_custom_call.1} parent=19 // pred_region
        %p214 = scmp.lt.s32.totalorder %s18, 1
        %s215 = scalar_select %p214, %s18, 1
        %p216 = scmp.lt.s32.totalorder %s19, 0
        %s217 = scalar_select %p216, %s19, 0
        %s218 = sadd.s32 %s217, %s215
        %s219 = smul.addr %s218, 8
        %s220 = scalar_lea.vmem %s1, %s219
      $region28: #{tpu_custom_call.1} parent=19 // pred_fallthru
        _
      // Predicated region
      $region29: #{tpu_custom_call.1} parent=19 // pred_check
        %p221 = pneg %p99
      $region30: #{tpu_custom_call.1} parent=19 // pred_check_branch
        %223 = sbr.rel (%p221) target = $region32
      $region31: #{tpu_custom_call.1} parent=19 // pred_region
        %s224 = smul.u32 8, %s19
        %p225 = scmp.lt.s32.totalorder %s18, 1
        %s226 = scalar_select %p225, %s18, 1
        %p227 = scmp.lt.s32.totalorder %s224, 7
        %s228 = scalar_select %p227, %s224, 7
        %s229 = smul.addr %s226, 8
        %s230 = sadd.s32 %s228, %s229
        %s231 = smul.addr %s230, 8
        %s232 = scalar_lea.vmem %s2, %s231
        %s233 = smul.u32 8, %s19
      $region32: #{tpu_custom_call.1} parent=19 // pred_fallthru
        _
      // Predicated region
      $region33: #{tpu_custom_call.1} parent=19 // pred_check
        %p234 = pneg %p127
      $region34: #{tpu_custom_call.1} parent=19 // pred_check_branch
        %236 = sbr.rel (%p234) target = $region36
      $region35: #{tpu_custom_call.1} parent=19 // pred_region
        %s237 = smul.u32 8, %s19
        %p238 = scmp.lt.s32.totalorder %s18, 1
        %s239 = scalar_select %p238, %s18, 1
        %p240 = scmp.lt.s32.totalorder %s237, 7
        %s241 = scalar_select %p240, %s237, 7
        %s242 = smul.addr %s239, 8
        %s243 = sadd.s32 %s241, %s242
        %s244 = smul.addr %s243, 8
        %s245 = scalar_lea.vmem %s3, %s244
        %s246 = smul.u32 8, %s19
      $region36: #{tpu_custom_call.1} parent=19 // pred_fallthru
        _
    $region20: #{tpu_custom_call.1} parent=5 // pred_fallthru
      _
    %p247 = scmp.le.s32.totalorder 1, %s11
    %p248 = scmp.lt.s32.totalorder %s11, 3
    %p249 = pnand %p247, %p248
    %p250 = pneg %p249
    // Predicated region
    $region37: #{tpu_custom_call.1} parent=5 // pred_check
      _
    $region38: #{tpu_custom_call.1} parent=5 // pred_check_branch
      %252 = sbr.rel (%p249) target = $region40
    $region39: #{tpu_custom_call.1} parent=5 // pred_region
      %s253 = ssub.s32 %s11, 1
      %p254 = scmp.lt.s32.totalorder %s20, 1
      %s255 = scalar_select %p254, %s20, 1
      %s256 = smul.addr %s255, 8
      %s257 = scalar_lea.vmem %s0, %s256
      %p258 = pneg %p49
      %p259 = pneg %p46
      %p260 = scmp.lt.s32.totalorder %s20, 1
      %s261 = scalar_select %p260, %s20, 1
      %p262 = scmp.lt.s32.totalorder %s21, 0
      %s263 = scalar_select %p262, %s21, 0
      %s264 = sadd.s32 %s263, %s261
      %s265 = smul.addr %s264, 8
      %s266 = scalar_lea.vmem %s1, %s265
      %p267 = pneg %p77
      %p268 = pneg %p74
      %s269 = smul.u32 8, %s21
      %p270 = scmp.lt.s32.totalorder %s20, 1
      %s271 = scalar_select %p270, %s20, 1
      %p272 = scmp.lt.s32.totalorder %s269, 7
      %s273 = scalar_select %p272, %s269, 7
      %s274 = smul.addr %s271, 8
      %s275 = sadd.s32 %s273, %s274
      %s276 = smul.addr %s275, 8
      %s277 = scalar_lea.vmem %s2, %s276
      %p278 = pneg %p105
      %p279 = pneg %p102
      %s280 = smul.u32 8, %s21
      %p281 = scmp.lt.s32.totalorder %s20, 1
      %s282 = scalar_select %p281, %s20, 1
      %p283 = scmp.lt.s32.totalorder %s280, 7
      %s284 = scalar_select %p283, %s280, 7
      %s285 = smul.addr %s282, 8
      %s286 = sadd.s32 %s284, %s285
      %s287 = smul.addr %s286, 8
      %s288 = scalar_lea.vmem %s3, %s287
      %p289 = pneg %p133
      %p290 = pneg %p130
      %p291 = pneg %p154
      %p292 = pneg %p151
      %p293 = pneg %p182
      %p294 = pneg %p179
      %s295 = smul.u32 8, %s21
      %p296 = scmp.lt.s32.totalorder %s20, 1
      %s297 = scalar_select %p296, %s20, 1
      %p298 = scmp.lt.s32.totalorder %s295, 7
      %s299 = scalar_select %p298, %s295, 7
      %s300 = smul.addr %s297, 8
      %s301 = sadd.s32 %s299, %s300
      %s302 = smul.addr %s301, 8
      %s303 = scalar_lea.vmem %s5, %s302
      %p304 = scmp.lt.s32.totalorder %s20, 1
      %s305 = scalar_select %p304, %s20, 1
      %s306 = smul.addr %s305, 8
      %s307 = scalar_lea.vmem %s0, %s306
      %p308 = scmp.lt.s32.totalorder %s20, 1
      %s309 = scalar_select %p308, %s20, 1
      %p310 = scmp.lt.s32.totalorder %s21, 0
      %s311 = scalar_select %p310, %s21, 0
      %s312 = sadd.s32 %s311, %s309
      %s313 = smul.addr %s312, 8
      %s314 = scalar_lea.vmem %s1, %s313
      %s315 = smul.u32 8, %s21
      %p316 = scmp.lt.s32.totalorder %s20, 1
      %s317 = scalar_select %p316, %s20, 1
      %p318 = scmp.lt.s32.totalorder %s315, 7
      %s319 = scalar_select %p318, %s315, 7
      %s320 = smul.addr %s317, 8
      %s321 = sadd.s32 %s319, %s320
      %s322 = smul.addr %s321, 8
      %s323 = scalar_lea.vmem %s2, %s322
      %s324 = smul.u32 8, %s21
      %s325 = smul.u32 8, %s21
      %p326 = scmp.lt.s32.totalorder %s20, 1
      %s327 = scalar_select %p326, %s20, 1
      %p328 = scmp.lt.s32.totalorder %s325, 7
      %s329 = scalar_select %p328, %s325, 7
      %s330 = smul.addr %s327, 8
      %s331 = sadd.s32 %s329, %s330
      %s332 = smul.addr %s331, 8
      %s333 = scalar_lea.vmem %s3, %s332
      %s334 = smul.u32 8, %s21
      %s335 = smul.u32 8, %s21
      %p336 = scmp.lt.s32.totalorder %s20, 1
      %s337 = scalar_select %p336, %s20, 1
      %p338 = scmp.lt.s32.totalorder %s335, 7
      %s339 = scalar_select %p338, %s335, 7
      %s340 = smul.addr %s337, 8
      %s341 = sadd.s32 %s339, %s340
      %s342 = smul.addr %s341, 8
      %s343 = scalar_lea.vmem %s5, %s342
      %s344 = smul.u32 8, %s21
      %v345 = vld [vmem:[%s323] sm:$0xff]
      %v346 = vld [vmem:[%s323 + $0x8] sm:$0xff]
      %v347 = vld [vmem:[%s323 + $0x10] sm:$0xff]
      %v348 = vld [vmem:[%s323 + $0x18] sm:$0xff]
      %v349 = vld [vmem:[%s323 + $0x20] sm:$0xff]
      %v350 = vld [vmem:[%s323 + $0x28] sm:$0xff]
      %v351 = vld [vmem:[%s323 + $0x30] sm:$0xff]
      %v352 = vld [vmem:[%s323 + $0x38] sm:$0xff]
      %v353 = vld [vmem:[%s4] sm:$0xff]
      %v354 = vld [vmem:[%s314] sm:$0xff]
      %v356 = vcombine.high %v354, %v354
      %v358 = vunpack.c.l.s4 1966171168
      %v359 = vunpack.c.0.s8 %v358
      %v360 = vlaneseq
      %v361 = vshrl.u32 %v360, 7
      %v362 = vsub.s32 %v359, %v361
      %v363 = vrot.slane %v354, %v362
      %v365 = vunpack.c.l.s4 1966171168
      %v366 = vunpack.c.0.s8 %v365
      %v367 = vlaneseq
      %v368 = vshrl.u32 %v367, 7
      %v369 = vsub.s32 %v366, %v368
      %v370 = vrot.slane %v356, %v369
      %v371 = vcombine.high %v363, %v363
      %v372 = vcombine.high %v370, %v370
      %v374 = vunpack.c.l.s4 1966171168
      %v375 = vunpack.c.0.s8 %v374
      %v376 = vlaneseq
      %v377 = vshrl.u32 %v376, 7
      %v378 = vsub.s32 %v375, %v377
      %v379 = vrot.slane %v363, %v378
      %v381 = vunpack.c.l.s4 1966171168
      %v382 = vunpack.c.0.s8 %v381
      %v383 = vlaneseq
      %v384 = vshrl.u32 %v383, 7
      %v385 = vsub.s32 %v382, %v384
      %v386 = vrot.slane %v370, %v385
      %v388 = vunpack.c.l.s4 1966171168
      %v389 = vunpack.c.0.s8 %v388
      %v390 = vlaneseq
      %v391 = vshrl.u32 %v390, 7
      %v392 = vsub.s32 %v389, %v391
      %v393 = vrot.slane %v371, %v392
      %v395 = vunpack.c.l.s4 1966171168
      %v396 = vunpack.c.0.s8 %v395
      %v397 = vlaneseq
      %v398 = vshrl.u32 %v397, 7
      %v399 = vsub.s32 %v396, %v398
      %v400 = vrot.slane %v372, %v399
      %v401 = vcombine.high %v379, %v379
      %v402 = vcombine.high %v386, %v386
      %v403 = vcombine.high %v393, %v393
      %v404 = vcombine.high %v400, %v400
      %v405 = vld [vmem:[%s307] sm:$0xff]
      %v406 = vlaneseq
      %v407 = vshrl.u32 %v406, 7
      %v408 = vsub.s32 0, %v407
      %v409 = vrot.slane %v379, %v408
      %v410 = vlaneseq
      %v411 = vshrl.u32 %v410, 7
      %v412 = vsub.s32 0, %v411
      %v413 = vrot.slane %v393, %v412
      %v414 = vlaneseq
      %v415 = vshrl.u32 %v414, 7
      %v416 = vsub.s32 0, %v415
      %v417 = vrot.slane %v401, %v416
      %v418 = vlaneseq
      %v419 = vshrl.u32 %v418, 7
      %v420 = vsub.s32 0, %v419
      %v421 = vrot.slane %v403, %v420
      %v422 = vlaneseq
      %v423 = vshrl.u32 %v422, 7
      %v424 = vsub.s32 0, %v423
      %v425 = vrot.slane %v386, %v424
      %v426 = vlaneseq
      %v427 = vshrl.u32 %v426, 7
      %v428 = vsub.s32 0, %v427
      %v429 = vrot.slane %v400, %v428
      %v430 = vlaneseq
      %v431 = vshrl.u32 %v430, 7
      %v432 = vsub.s32 0, %v431
      %v433 = vrot.slane %v402, %v432
      %v434 = vlaneseq
      %v435 = vshrl.u32 %v434, 7
      %v436 = vsub.s32 0, %v435
      %v437 = vrot.slane %v404, %v436
      %v446 = vadd.f32 %v409, %v405
      %v447 = vadd.f32 %v413, %v405
      %v448 = vadd.f32 %v417, %v405
      %v449 = vadd.f32 %v421, %v405
      %v450 = vadd.f32 %v425, %v405
      %v451 = vadd.f32 %v429, %v405
      %v452 = vadd.f32 %v433, %v405
      %v453 = vadd.f32 %v437, %v405
      %vm454 = vcmask 64512
      %v456 = vsel %vm454, %v345, 0
      %v459 = vsel %vm454, %v346, 0
      %v462 = vsel %vm454, %v347, 0
      %v465 = vsel %vm454, %v348, 0
      %v468 = vsel %vm454, %v349, 0
      %v471 = vsel %vm454, %v350, 0
      %v474 = vsel %vm454, %v351, 0
      %v477 = vsel %vm454, %v352, 0
      %479 = vmatprep.subr.mxu0 0.0
      %480 = vmatpush1.msra.mxu0 %v353
      %481 = vmatprep.subr.mxu0 0.0
      %482 = vmatpush1.msra.mxu0 0.0
      %483 = vmatprep.subr.mxu0 0.0
      %484 = vmatpush1.msra.mxu0 0.0
      %485 = vmatprep.subr.mxu0 0.0
      %486 = vmatpush1.msra.mxu0 0.0
      %487 = vmatprep.subr.mxu0 0.0
      %488 = vmatpush1.msra.mxu0 0.0
      %489 = vmatprep.subr.mxu0 0.0
      %490 = vmatpush1.msra.mxu0 0.0
      %491 = vmatprep.subr.mxu0 0.0
      %492 = vmatpush1.msra.mxu0 0.0
      %493 = vmatprep.subr.mxu0 0.0
      %494 = vmatpush1.msra.mxu0 0.0
      %495 = vmatprep.subr.mxu0 0.0
      %496 = vmatpush1.msra.mxu0 0.0
      %497 = vmatprep.subr.mxu0 0.0
      %498 = vmatpush1.msra.mxu0 0.0
      %499 = vmatprep.subr.mxu0 0.0
      %500 = vmatpush1.msra.mxu0 0.0
      %501 = vmatprep.subr.mxu0 0.0
      %502 = vmatpush1.msra.mxu0 0.0
      %503 = vmatprep.subr.mxu0 0.0
      %504 = vmatpush1.msra.mxu0 0.0
      %505 = vmatprep.subr.mxu0 0.0
      %506 = vmatpush1.msra.mxu0 0.0
      %507 = vmatprep.subr.mxu0 0.0
      %508 = vmatpush1.msra.mxu0 0.0
      %509 = vmatprep.subr.mxu0 0.0
      %510 = vmatpush1.msra.mxu0 0.0
      %511 = vmatprep.subr.mxu0 0.0
      %512 = vmatpush1.msra.mxu0 0.0
      %513 = vmatprep.subr.mxu0 0.0
      %514 = vmatpush1.msra.mxu0 0.0
      %515 = vmatprep.subr.mxu0 0.0
      %516 = vmatpush1.msra.mxu0 0.0
      %517 = vmatprep.subr.mxu0 0.0
      %518 = vmatpush1.msra.mxu0 0.0
      %519 = vmatprep.subr.mxu0 0.0
      %520 = vmatpush1.msra.mxu0 0.0
      %521 = vmatprep.subr.mxu0 0.0
      %522 = vmatpush1.msra.mxu0 0.0
      %523 = vmatprep.subr.mxu0 0.0
      %524 = vmatpush1.msra.mxu0 0.0
      %525 = vmatprep.subr.mxu0 0.0
      %526 = vmatpush1.msra.mxu0 0.0
      %527 = vmatprep.subr.mxu0 0.0
      %528 = vmatpush1.msra.mxu0 0.0
      %529 = vmatprep.subr.mxu0 0.0
      %530 = vmatpush1.msra.mxu0 0.0
      %531 = vmatprep.subr.mxu0 0.0
      %532 = vmatpush1.msra.mxu0 0.0
      %533 = vmatprep.subr.mxu0 0.0
      %534 = vmatpush1.msra.mxu0 0.0
      %535 = vmatprep.subr.mxu0 0.0
      %536 = vmatpush1.msra.mxu0 0.0
      %537 = vmatprep.subr.mxu0 0.0
      %538 = vmatpush1.msra.mxu0 0.0
      %539 = vmatprep.subr.mxu0 0.0
      %540 = vmatpush1.msra.mxu0 0.0
      %541 = vmatprep.subr.mxu0 0.0
      %542 = vmatpush1.msra.mxu0 0.0
      %543 = vmatprep.mubr.f32.mxu0 0.0
      %544 = vmatmul.mubr.f32.gmra.mrb[0].mxu0 %v456
      %v545 = vpop.f32.mrb[0].mxu0
      %v546 = vadd.f32 %v446, %v545
      %v547 = vpop.f32.mrb[0].mxu0
      %548 = vmatprep.mubr.f32.mxu0 0.0
      %549 = vmatmul.mubr.f32.gmra.mrb[0].mxu0 %v459
      %v550 = vpop.f32.mrb[0].mxu0
      %v551 = vadd.f32 %v447, %v550
      %v552 = vpop.f32.mrb[0].mxu0
      %553 = vmatprep.mubr.f32.mxu0 0.0
      %554 = vmatmul.mubr.f32.gmra.mrb[0].mxu0 %v462
      %v555 = vpop.f32.mrb[0].mxu0
      %v556 = vadd.f32 %v448, %v555
      %v557 = vpop.f32.mrb[0].mxu0
      %558 = vmatprep.mubr.f32.mxu0 0.0
      %559 = vmatmul.mubr.f32.gmra.mrb[0].mxu0 %v465
      %v560 = vpop.f32.mrb[0].mxu0
      %v561 = vadd.f32 %v449, %v560
      %v562 = vpop.f32.mrb[0].mxu0
      %563 = vmatprep.mubr.f32.mxu0 0.0
      %564 = vmatmul.mubr.f32.gmra.mrb[0].mxu0 %v468
      %v565 = vpop.f32.mrb[0].mxu0
      %v566 = vadd.f32 %v450, %v565
      %v567 = vpop.f32.mrb[0].mxu0
      %568 = vmatprep.mubr.f32.mxu0 0.0
      %569 = vmatmul.mubr.f32.gmra.mrb[0].mxu0 %v471
      %v570 = vpop.f32.mrb[0].mxu0
      %v571 = vadd.f32 %v451, %v570
      %v572 = vpop.f32.mrb[0].mxu0
      %573 = vmatprep.mubr.f32.mxu0 0.0
      %574 = vmatmul.mubr.f32.gmra.mrb[0].mxu0 %v474
      %v575 = vpop.f32.mrb[0].mxu0
      %v576 = vadd.f32 %v452, %v575
      %v577 = vpop.f32.mrb[0].mxu0
      %578 = vmatprep.mubr.f32.mxu0 0.0
      %579 = vmatmul.mubr.f32.gmra.mrb[0].mxu0 %v477
      %v580 = vpop.f32.mrb[0].mxu0
      %v581 = vadd.f32 %v453, %v580
      %v582 = vpop.f32.mrb[0].mxu0
      %583 = vdwg.mxu0
      %v584 = vld [vmem:[%s333] sm:$0xff]
      %v585 = vld [vmem:[%s333 + $0x8] sm:$0xff]
      %v586 = vld [vmem:[%s333 + $0x10] sm:$0xff]
      %v587 = vld [vmem:[%s333 + $0x18] sm:$0xff]
      %v588 = vld [vmem:[%s333 + $0x20] sm:$0xff]
      %v589 = vld [vmem:[%s333 + $0x28] sm:$0xff]
      %v590 = vld [vmem:[%s333 + $0x30] sm:$0xff]
      %v591 = vld [vmem:[%s333 + $0x38] sm:$0xff]
      %593 = vset.pattern.permute.xlu0 0
      %594 = vperm.xlu0 %593, %v584
      %v595 = vpop.permute.xlu0 %594
      %598 = vset.pattern.permute.xlu0 0
      %599 = vperm.xlu0 %598, %v585
      %v600 = vpop.permute.xlu0 %599
      %603 = vset.pattern.permute.xlu0 0
      %604 = vperm.xlu0 %603, %v586
      %v605 = vpop.permute.xlu0 %604
      %608 = vset.pattern.permute.xlu0 0
      %609 = vperm.xlu0 %608, %v587
      %v610 = vpop.permute.xlu0 %609
      %613 = vset.pattern.permute.xlu0 0
      %614 = vperm.xlu0 %613, %v588
      %v615 = vpop.permute.xlu0 %614
      %618 = vset.pattern.permute.xlu0 0
      %619 = vperm.xlu0 %618, %v589
      %v620 = vpop.permute.xlu0 %619
      %623 = vset.pattern.permute.xlu0 0
      %624 = vperm.xlu0 %623, %v590
      %v625 = vpop.permute.xlu0 %624
      %628 = vset.pattern.permute.xlu0 0
      %629 = vperm.xlu0 %628, %v591
      %v630 = vpop.permute.xlu0 %629
      %v632 = vmul.f32 %v546, %v595
      %v633 = vmul.f32 %v551, %v600
      %v634 = vmul.f32 %v556, %v605
      %v635 = vmul.f32 %v561, %v610
      %v636 = vmul.f32 %v566, %v615
      %v637 = vmul.f32 %v571, %v620
      %v638 = vmul.f32 %v576, %v625
      %v639 = vmul.f32 %v581, %v630
      %vm640 = vcmask 261120
      %641 = vst.msk [vmem:[%s343] sm:$0xff] %vm640, %v632
      %642 = vst.msk [vmem:[%s343 + $0x8] sm:$0xff] %vm640, %v633
      %643 = vst.msk [vmem:[%s343 + $0x10] sm:$0xff] %vm640, %v634
      %644 = vst.msk [vmem:[%s343 + $0x18] sm:$0xff] %vm640, %v635
      %645 = vst.msk [vmem:[%s343 + $0x20] sm:$0xff] %vm640, %v636
      %646 = vst.msk [vmem:[%s343 + $0x28] sm:$0xff] %vm640, %v637
      %647 = vst.msk [vmem:[%s343 + $0x30] sm:$0xff] %vm640, %v638
      %648 = vst.msk [vmem:[%s343 + $0x38] sm:$0xff] %vm640, %v639
      %s649 = smul.u32 8, %s21
      %p650 = scmp.lt.s32.totalorder %s20, 1
      %s651 = scalar_select %p650, %s20, 1
      %p652 = scmp.lt.s32.totalorder %s649, 7
      %s653 = scalar_select %p652, %s649, 7
      %s654 = smul.addr %s651, 8
      %s655 = sadd.s32 %s653, %s654
      %s656 = smul.addr %s655, 8
      %s657 = scalar_lea.vmem %s5, %s656
      // Predicated region
      $region41: #{tpu_custom_call.1} parent=39 // pred_check
        %p658 = pneg %p179
      $region42: #{tpu_custom_call.1} parent=39 // pred_check_branch
        %660 = sbr.rel (%p658) target = $region44
      $region43: #{tpu_custom_call.1} parent=39 // pred_region
        %s661 = smul.u32 8, %s21
      $region44: #{tpu_custom_call.1} parent=39 // pred_fallthru
        _
    $region40: #{tpu_custom_call.1} parent=5 // pred_fallthru
      _
    %p662 = scmp.le.s32.totalorder 2, %s11
    // Predicated region
    $region45: #{tpu_custom_call.1} parent=5 // pred_check
      %p663 = pneg %p662
    $region46: #{tpu_custom_call.1} parent=5 // pred_check_branch
      %665 = sbr.rel (%p663) target = $region48
    $region47: #{tpu_custom_call.1} parent=5 // pred_region
      %s666 = ssub.s32 %s11, 2
      // Predicated region
      $region49: #{tpu_custom_call.1} parent=47 // pred_check
        %p667 = pneg %p185
      $region50: #{tpu_custom_call.1} parent=47 // pred_check_branch
        %669 = sbr.rel (%p667) target = $region52
      $region51: #{tpu_custom_call.1} parent=47 // pred_region
        %s670 = smul.u32 8, %s23
        %p671 = scmp.lt.s32.totalorder %s22, 1
        %s672 = scalar_select %p671, %s22, 1
        %p673 = scmp.lt.s32.totalorder %s670, 7
        %s674 = scalar_select %p673, %s670, 7
        %s675 = smul.addr %s672, 8
        %s676 = sadd.s32 %s674, %s675
        %s677 = smul.addr %s676, 8
        %s678 = scalar_lea.vmem %s5, %s677
      $region52: #{tpu_custom_call.1} parent=47 // pred_fallthru
        _
    $region48: #{tpu_custom_call.1} parent=5 // pred_fallthru
      _
  $region6: #{tpu_custom_call.1} parent=0 // loop_footer
    %s15 = sadd.s32 1, %s11
  $region7: #{tpu_custom_call.1} parent=0 // loop_footer_branch
    %10 = sbr.rel target = $region3
  $region8: #{tpu_custom_call.1} parent=0 // loop_exit
    _

</llo_original>
